<compile_context>
chip_gen: v6e
topology: v6e:2x2x1
jax: 0.10.0
libtpu: 0.0.40
codegen_flags: <defaults>
</compile_context>

<pallas_src>
import jax
import jax.numpy as jnp
from jax.experimental import pallas as pl
from jax.experimental.pallas import tpu as pltpu


def _round_up(x, m):
    return ((x + m - 1) // m) * m


def _vmem_capacity_bytes():
    """Best-effort per-core VMEM capacity (generation gating)."""
    try:
        return int(pltpu.get_tpu_info().vmem_capacity_bytes)
    except Exception:
        pass
    try:
        kind = jax.devices()[0].device_kind.lower()
        if "v7" in kind:
            return 64 * 1024 * 1024       # v7x: 64 MiB per TensorCore
        return 128 * 1024 * 1024          # v5e / v6e: 128 MiB
    except Exception:
        return 64 * 1024 * 1024           # conservative fallback


def _fused_proj_sigmoid_kernel(x_ref, w_ref, o_ref, acc_ref):
    """(tile_m, tk) x-tile @ (tk, n_pad) weight tile -> sigmoid (on last K).

    x is loaded in its HBM dtype and cast to bf16 in-vreg (no standalone
    pad/cast pass over x).  f32 accumulation in VMEM scratch; sigmoid + store
    only on the final K step (P3 init/finalize).  Store dtype = o_ref.dtype
    (bf16 by default => half the writeback traffic).
    """
    k = pl.program_id(1)

    @pl.when(k == 0)
    def _():
        acc_ref[...] = jnp.zeros_like(acc_ref)

    acc_ref[...] += jnp.dot(
        x_ref[...].astype(jnp.bfloat16), w_ref[...],
        preferred_element_type=jnp.float32)

    @pl.when(k == pl.num_programs(1) - 1)
    def _():
        o_ref[...] = jax.nn.sigmoid(acc_ref[...]).astype(o_ref.dtype)


def _select_tiles(M, D, n_pad, out_bytes, budget_bytes, k_tile=None):
    """Pick (tile_m, tk) under the VMEM budget.  Prefers big row tiles."""
    # Row tile: as big as possible (per-step overhead amortization), but cap
    # so large-M calls still get >= ~4 grid steps (v7x 2-TC sharding of the
    # "parallel" M axis).  Multiples of 16 keep bf16 sublane packing clean.
    tile_m = min(1024, _round_up(max(M, 1), 16))
    multi_core_cap = max(128, _round_up(pl.cdiv(M, 4), 16))
    tile_m = max(16, min(tile_m, multi_core_cap))

    def vmem_bytes(tm, tk, k_split):
        w_bufs = 2 if k_split else 1      # resident weight when no K axis
        return (2 * tm * tk * 4           # x tile, f32, double-buffered
                + w_bufs * tk * n_pad * 2           # weight tile, bf16
                + 2 * tm * n_pad * out_bytes        # output tile
                + tm * n_pad * 4)                   # f32 accumulator scratch

    if k_tile is not None and 0 < k_tile < D and D % k_tile == 0:
        tk = int(k_tile)                  # forced (testing / tuning hook)
    else:
        tk = D
        # Shrink tile_m first, but not below 256 rows.
        while tile_m > 256 and vmem_bytes(tile_m, tk, False) > budget_bytes:
            tile_m = _round_up(tile_m // 2, 16)
        # Still over budget (very large D): split K, keep big row tiles.
        if vmem_bytes(tile_m, tk, False) > budget_bytes:
            for cand in (2048, 1024, 512, 256, 128):
                if cand < D and D % cand == 0 and \
                        vmem_bytes(tile_m, cand, True) <= budget_bytes:
                    tk = cand
                    break
    # Last resort: shrink tile_m further.
    while tile_m > 16 and vmem_bytes(tile_m, tk, tk < D) > budget_bytes:
        tile_m = _round_up(tile_m // 2, 16)

    return tile_m, tk, vmem_bytes(tile_m, tk, tk < D)


def fused_proj_sigmoid(x2d, w_fused, *, out_dtype=jnp.bfloat16,
                       k_tile=None, x_buffers=2):
    """sigmoid(x2d @ w_fused) in one fused Pallas kernel.

    x2d:     (M, D) float (read once; cast to bf16 inside the kernel)
    w_fused: (D, N) float, or already (D, n_pad) bf16
    returns: (M, n_pad) in `out_dtype`.  Only the first N columns are valid;
             padded columns hold sigmoid(0)=0.5 and must never be consumed.
    """
    M, D = x2d.shape
    Dw, N = w_fused.shape
    assert Dw == D

    # Lane-dense weight/output: pad fused width to a multiple of 128 (done
    # once at module init on the static-weight path).
    n_pad = _round_up(N, 128)
    if w_fused.dtype != jnp.bfloat16 or N != n_pad:
        w_p = jnp.zeros((D, n_pad), dtype=jnp.bfloat16)
        w_p = w_p.at[:, :N].set(w_fused.astype(jnp.bfloat16))
    else:
        w_p = w_fused

    out_bytes = jnp.dtype(out_dtype).itemsize
    vmem_cap = _vmem_capacity_bytes()
    budget = max(16 * 1024 * 1024, vmem_cap // 2 - 8 * 1024 * 1024)
    tile_m, tk, usage = _select_tiles(M, D, n_pad, out_bytes, budget, k_tile)

    grid = (pl.cdiv(M, tile_m), pl.cdiv(D, tk))

    x_spec_kwargs = {}
    if x_buffers != 2:                    # optional Buffered(n) sweep (v7x)
        x_spec_kwargs["pipeline_mode"] = pl.Buffered(x_buffers)

    # Weight is re-streamed per row tile only when the K axis is split.
    w_reads = grid[0] if grid[1] > 1 else 1
    cost = pl.CostEstimate(
        flops=int(2 * M * D * n_pad),
        transcendentals=int(M * n_pad),
        bytes_accessed=int(M * D * x2d.dtype.itemsize
                           + w_reads * D * n_pad * 2
                           + M * n_pad * out_bytes),
    )

    vmem_limit = int(min(3 * vmem_cap // 4,
                         max(32 * 1024 * 1024, 2 * usage)))

    out = pl.pallas_call(
        _fused_proj_sigmoid_kernel,
        out_shape=jax.ShapeDtypeStruct((M, n_pad), out_dtype),
        grid_spec=pltpu.PrefetchScalarGridSpec(
            num_scalar_prefetch=0,
            grid=grid,
            in_specs=[
                pl.BlockSpec((tile_m, tk), lambda i, k: (i, k),
                             **x_spec_kwargs),                 # token rows
                pl.BlockSpec((tk, n_pad), lambda i, k: (k, 0)),  # weights
            ],
            out_specs=pl.BlockSpec((tile_m, n_pad), lambda i, k: (i, 0)),
            scratch_shapes=[pltpu.VMEM((tile_m, n_pad), jnp.float32)],
        ),
        compiler_params=pltpu.CompilerParams(
            dimension_semantics=("parallel", "arbitrary"),
            vmem_limit_bytes=vmem_limit,
        ),
        cost_estimate=cost,
    )(x2d, w_p)
    return out


class FastWeightHpGLUPallas:
    """JAX/Pallas port of FastWeightHpGLU (forward only)."""

    def __init__(self, embed_dim, num_heads, use_lr=True, use_wd=False,
                 use_momentum=False, bias=False, key=None,
                 out_dtype=jnp.bfloat16):
        assert not bias, "reference config uses bias=False"
        self.embed_dim = embed_dim
        self.num_heads = num_heads
        self.out_dtype = out_dtype
        if key is None:
            key = jax.random.PRNGKey(0)

        # Mimic nn.Linear default init: uniform(-1/sqrt(D), 1/sqrt(D)).
        bound = 1.0 / (embed_dim ** 0.5)
        self.branches = []   # (branch_name, [W_w1, W_w2, W_w3]); W: (H, D) f32
        for name, enabled in (("lr_dict", use_lr), ("wd_dict", use_wd),
                              ("momentum_dict", use_momentum)):
            if not enabled:
                continue
            ws = []
            for _ in range(3):
                key, sub = jax.random.split(key)
                ws.append(jax.random.uniform(
                    sub, (num_heads, embed_dim), dtype=jnp.float32,
                    minval=-bound, maxval=bound))
            self.branches.append((name, ws))

        if self.branches:
            all_w = [w for _, ws in self.branches for w in ws]
            n_total = num_heads * len(all_w)
            n_pad = _round_up(n_total, 128)
            w_fused = jnp.concatenate([w.T for w in all_w], axis=1)  # (D, N)
            # Pad + bf16-cast once at init (static weights, no per-call cost).
            self.w_fused = jnp.zeros((embed_dim, n_pad), jnp.bfloat16
                                     ).at[:, :n_total].set(
                                         w_fused.astype(jnp.bfloat16))
            self.n_total = n_total
        else:
            self.w_fused = None
            self.n_total = 0

    def __call__(self, x, *, k_tile=None):
        """x: (batch, seq, embed_dim) -> dict of dicts matching the module."""
        out = {"lr_dict": {}, "wd_dict": {}, "momentum_dict": {}}
        if self.w_fused is None:
            return out
        B, T, D = x.shape
        x2d = x.reshape(B * T, D)                       # free (leading dims)
        y = fused_proj_sigmoid(x2d, self.w_fused,
                               out_dtype=self.out_dtype,
                               k_tile=k_tile)           # (B*T, n_pad)
        y = y.reshape(B, T, -1)                         # free reshape
        H = self.num_heads
        slab = 0
        for name, _ in self.branches:
            for wname in ("w1", "w2", "w3"):
                # Per-slab lazy slice of the padded buffer; padded 0.5
                # columns are never exposed, no full-width [:, :N] copy.
                out[name][wname] = y[:, :, slab * H:(slab + 1) * H]
                slab += 1
        return out


if __name__ == "__main__":
    key = jax.random.PRNGKey(0)
    k_x, k_params, k_x2, k_w2 = jax.random.split(key, 4)

    # ---- Test 1: module path, all three branches (9 fused projections) ----
    batch, seq, embed_dim, num_heads = 2, 8, 32, 8
    x = jax.random.normal(k_x, (batch, seq, embed_dim), dtype=jnp.float32)

    module = FastWeightHpGLUPallas(embed_dim, num_heads, use_lr=True,
                                   use_wd=True, use_momentum=True,
                                   bias=False, key=k_params)
    result = module(x)
    jax.block_until_ready(result)

    # Reference check in plain JAX (f32).  bf16 matmul + bf16 output =>
    # loosened tolerance.
    for name, ws in module.branches:
        for idx, wname in enumerate(("w1", "w2", "w3")):
            W = ws[idx]                                  # (H, D)
            ref = jax.nn.sigmoid(jnp.einsum("btd,hd->bth", x, W))
            got = result[name][wname].astype(jnp.float32)
            assert got.shape == (batch, seq, num_heads)
            assert jnp.allclose(got, ref, atol=2e-2, rtol=2e-2), (
                f"mismatch in {name}/{wname}")

    # ---- Test 2: ragged M + forced K-split accumulator path ---------------
    M2, D2, N2 = 26, 256, 72       # M not a multiple of 8; D = 2 K tiles
    x2 = jax.random.normal(k_x2, (M2, D2), dtype=jnp.float32)
    w2 = jax.random.uniform(k_w2, (D2, N2), dtype=jnp.float32,
                            minval=-1.0 / D2 ** 0.5, maxval=1.0 / D2 ** 0.5)
    y2 = fused_proj_sigmoid(x2, w2, k_tile=128)
    jax.block_until_ready(y2)
    ref2 = jax.nn.sigmoid(x2 @ w2)
    assert jnp.allclose(y2[:, :N2].astype(jnp.float32), ref2,
                        atol=2e-2, rtol=2e-2), "mismatch in K-split path"

    print("KERNEL_OK")
</pallas_src>

<mosaic_0001>
module attributes {stable_mosaic.version = 11 : i64} {
  func.func @_fused_proj_sigmoid_kernel(%arg0: i32, %arg1: i32, %arg2: memref<16x32xf32, #tpu.memory_space<vmem>>, %arg3: memref<32x128xbf16, #tpu.memory_space<vmem>>, %arg4: memref<16x128xbf16, #tpu.memory_space<vmem>>, %arg5: memref<16x128xf32, #tpu.memory_space<vmem>>) attributes {dimension_semantics = [#tpu.dimension_semantics<parallel>, #tpu.dimension_semantics<arbitrary>], iteration_bounds = array<i64: 1, 1>, scalar_prefetch = 0 : i64, scratch_operands = 1 : i64, tpu.core_type = #tpu.core_type<tc>, window_params = [{transform_indices = @transform_0, window_bounds = array<i64: 16, 32>}, {transform_indices = @transform_1, window_bounds = array<i64: 32, 128>}, {transform_indices = @transform_2, window_bounds = array<i64: 16, 128>}]} {
    %c0_i32 = arith.constant 0 : i32
    %0 = arith.cmpi eq, %arg1, %c0_i32 : i32
    %1 = arith.extui %0 : i1 to i32
    %c0_i32_0 = arith.constant 0 : i32
    %2 = arith.cmpi ne, %1, %c0_i32_0 : i32
    scf.if %2 {
      %cst_10 = arith.constant 0.000000e+00 : f32
      %13 = vector.broadcast %cst_10 : f32 to vector<16x128xf32>
      %c0_11 = arith.constant 0 : index
      %c0_12 = arith.constant 0 : index
      %14 = vector.load %arg5[%c0_11, %c0_12] : memref<16x128xf32, #tpu.memory_space<vmem>>, vector<16x128xf32>
      tpu.vector_store %arg5[%c0_11, %c0_12], %13 {strides = array<i32>} : memref<16x128xf32, #tpu.memory_space<vmem>>, vector<16x128xf32>,
    } else {
    }
    %c0 = arith.constant 0 : index
    %c0_1 = arith.constant 0 : index
    %3 = vector.load %arg5[%c0, %c0_1] : memref<16x128xf32, #tpu.memory_space<vmem>>, vector<16x128xf32>
    %c0_2 = arith.constant 0 : index
    %c0_3 = arith.constant 0 : index
    %4 = vector.load %arg2[%c0_2, %c0_3] : memref<16x32xf32, #tpu.memory_space<vmem>>, vector<16x32xf32>
    %5 = arith.truncf %4 : vector<16x32xf32> to vector<16x32xbf16>
    %c0_4 = arith.constant 0 : index
    %c0_5 = arith.constant 0 : index
    %6 = vector.load %arg3[%c0_4, %c0_5] : memref<32x128xbf16, #tpu.memory_space<vmem>>, vector<32x128xbf16>
    %cst = arith.constant dense<0.000000e+00> : vector<16x128xf32>
    %7 = tpu.matmul %5, %6, %cst {dimension_numbers = #tpu.dot_dimension_numbers<[1], [0], [0], [1], [0, 0, 1, 1], [], []>} : vector<16x32xbf16>, vector<32x128xbf16>, vector<16x128xf32> -> vector<16x128xf32>
    %8 = arith.addf %3, %7 : vector<16x128xf32>
    %c0_6 = arith.constant 0 : index
    %c0_7 = arith.constant 0 : index
    %9 = vector.load %arg5[%c0_6, %c0_7] : memref<16x128xf32, #tpu.memory_space<vmem>>, vector<16x128xf32>
    tpu.vector_store %arg5[%c0_6, %c0_7], %8 {strides = array<i32>} : memref<16x128xf32, #tpu.memory_space<vmem>>, vector<16x128xf32>,
    %c0_i32_8 = arith.constant 0 : i32
    %10 = arith.cmpi eq, %arg1, %c0_i32_8 : i32
    %11 = arith.extui %10 : i1 to i32
    %c0_i32_9 = arith.constant 0 : i32
    %12 = arith.cmpi ne, %11, %c0_i32_9 : i32
    scf.if %12 {
      %c0_10 = arith.constant 0 : index
      %c0_11 = arith.constant 0 : index
      %13 = vector.load %arg5[%c0_10, %c0_11] : memref<16x128xf32, #tpu.memory_space<vmem>>, vector<16x128xf32>
      %14 = arith.negf %13 : vector<16x128xf32>
      %15 = math.exp %14 : vector<16x128xf32>
      %cst_12 = arith.constant 1.000000e+00 : f32
      %16 = vector.broadcast %cst_12 : f32 to vector<16x128xf32>
      %17 = arith.addf %16, %15 : vector<16x128xf32>
      %18 = arith.divf %16, %17 : vector<16x128xf32>
      %19 = arith.truncf %18 : vector<16x128xf32> to vector<16x128xbf16>
      %c0_13 = arith.constant 0 : index
      %c0_14 = arith.constant 0 : index
      %20 = vector.load %arg4[%c0_13, %c0_14] : memref<16x128xbf16, #tpu.memory_space<vmem>>, vector<16x128xbf16>
      tpu.vector_store %arg4[%c0_13, %c0_14], %19 {strides = array<i32>} : memref<16x128xbf16, #tpu.memory_space<vmem>>, vector<16x128xbf16>,
    } else {
    }
    return
  }
  func.func @transform_0(%arg0: i32, %arg1: i32) -> (i32, i32) {
    %c0_i32 = arith.constant 0 : i32
    return %arg0, %arg1 : i32, i32
  }
  func.func @transform_1(%arg0: i32, %arg1: i32) -> (i32, i32) {
    %c0_i32 = arith.constant 0 : i32
    %c0_i32_0 = arith.constant 0 : i32
    return %arg1, %c0_i32 : i32, i32
  }
  func.func @transform_2(%arg0: i32, %arg1: i32) -> (i32, i32) {
    %c0_i32 = arith.constant 0 : i32
    %c0_i32_0 = arith.constant 0 : i32
    return %arg0, %c0_i32 : i32, i32
  }
}

</mosaic_0001>

<llo_original>
// kernel: tpu_custom_call.1
$region0: #{tpu_custom_call.1}
  #allocation0 [shape = 'u32[]', space=smem, size = 0x4, offset = 0x4, fixed_abs, tag = 'smem constant byte address 0x4 - core index']
  #allocation1 [shape = 'u32[144,128]{1,0:T(1,128)}', space=vmem, size = 0x12000, scoped, tag = 'internal scratch']
  #allocation2 [shape = 'f32[16,128]{1,0:T(8,128)}', space=vmem, size = 0x2000, scoped, tag = 'scratch operand']
  %s0 = inlined_call_operand.hbm [shape: f32[16,32], index: 0, kind: input, shape index: {}]
  %s1 = inlined_call_operand.hbm [shape: bf16[32,128], index: 1, kind: input, shape index: {}]
  %s2 = inlined_call_operand.hbm [shape: bf16[16,128], index: 2, kind: output, shape index: {}]
  %s3 = sld [smem:[#allocation0]]
  $region34: #{tpu_custom_call.1} parent=0
    _
  %s5 = ssub.s32 1, %s3
  %s6 = scalar_select 0, %s5, %s3
  $region1: #{tpu_custom_call.1} parent=0
    #allocation3 [shape = 'u8[8192]{0}', space=vmem, size = 0x2000, scoped, tag = 'input window, operand 0, single buffered']
    #allocation4 [shape = 's32[1]{0}', space=sflag, size = 0x4, scoped, tag = 'scoped memory for tpu_custom_call.1']
    #allocation5 [shape = 's32[1]{0}', space=sflag, size = 0x4, scoped, tag = 'scoped memory for tpu_custom_call.1']
    #allocation6 [shape = 'u8[8192]{0}', space=vmem, size = 0x2000, scoped, tag = 'input window, operand 1, single buffered']
    #allocation7 [shape = 's32[1]{0}', space=sflag, size = 0x4, scoped, tag = 'scoped memory for tpu_custom_call.1']
    #allocation8 [shape = 'u8[4096]{0}', space=vmem, size = 0x1000, scoped, tag = 'output window, operand 0, single buffered']
    %7 = vsyncpa [#allocation4], 0
    %8 = vsyncpa [#allocation7], 0
    %9 = vsyncpa [#allocation5], 0
    // Predicated region
    $region2: #{tpu_custom_call.1} parent=1 // pred_check
      _
    $region3: #{tpu_custom_call.1} parent=1 // pred_check_branch
      %11 = sbr.rel (0) target = $region5
    $region4: #{tpu_custom_call.1} parent=1 // pred_region
      %s13 = ssub.s32 256, 256
      %14 = vsyncadd [#allocation4], %s13
      %s15 = sshll.u32 [#allocation3], 4
      %s16 = int_to_ptr.vmem [resolvable:$true] %s15
      %21 = dma.hbm_to_vmem [thread:$0]  %s0, 256, %s16, [#allocation4], 128, 128, 8
    $region5: #{tpu_custom_call.1} parent=1 // pred_fallthru
      _
    // Predicated region
    $region6: #{tpu_custom_call.1} parent=1 // pred_check
      _
    $region7: #{tpu_custom_call.1} parent=1 // pred_check_branch
      %23 = sbr.rel (0) target = $region9
    $region8: #{tpu_custom_call.1} parent=1 // pred_region
      %s25 = ssub.s32 256, 256
      %26 = vsyncadd [#allocation7], %s25
      %s27 = sshll.u32 [#allocation6], 4
      %s28 = int_to_ptr.vmem [resolvable:$true] %s27
      %33 = dma.hbm_to_vmem [thread:$0]  %s1, 256, %s28, [#allocation7], 64, 64, 4
    $region9: #{tpu_custom_call.1} parent=1 // pred_fallthru
      _
    // Predicated region
    $region10: #{tpu_custom_call.1} parent=1 // pred_check
      _
    $region11: #{tpu_custom_call.1} parent=1 // pred_check_branch
      %35 = sbr.rel (0) target = $region13
    $region12: #{tpu_custom_call.1} parent=1 // pred_region
      %36 = dma.done [#allocation4], 256
    $region13: #{tpu_custom_call.1} parent=1 // pred_fallthru
      _
    // Predicated region
    $region14: #{tpu_custom_call.1} parent=1 // pred_check
      _
    $region15: #{tpu_custom_call.1} parent=1 // pred_check_branch
      %38 = sbr.rel (0) target = $region17
    $region16: #{tpu_custom_call.1} parent=1 // pred_region
      %39 = dma.done [#allocation7], 256
    $region17: #{tpu_custom_call.1} parent=1 // pred_fallthru
      _
    %p41 = scmp.eq.s32.totalorder 0, 0
    // Predicated region
    $region18: #{tpu_custom_call.1} parent=1 // pred_check
      %p42 = pneg %p41
    $region19: #{tpu_custom_call.1} parent=1 // pred_check_branch
      %44 = sbr.rel (%p42) target = $region21
    $region20: #{tpu_custom_call.1} parent=1 // pred_region
      %45 = vst [vmem:[#allocation2] sm:$0xff] 0.0
      %46 = vst [vmem:[#allocation2 + $0x8] sm:$0xff] 0.0
    $region21: #{tpu_custom_call.1} parent=1 // pred_fallthru
      _
    %v47 = vld [vmem:[#allocation2] sm:$0xff]
    %v48 = vld [vmem:[#allocation2 + $0x8] sm:$0xff]
    %v49 = vld [vmem:[#allocation3] sm:$0xff]
    %v50 = vld [vmem:[#allocation3 + $0x8] sm:$0xff]
    %v51 = vpack.c.bf16 %v50, %v49
    %v52 = vld [vmem:[#allocation6] sm:$0xf]
    %v53 = vld [vmem:[#allocation6 + $0x4] sm:$0xf]
    %v54 = vld [vmem:[#allocation6 + $0x8] sm:$0xf]
    %v55 = vld [vmem:[#allocation6 + $0xc] sm:$0xf]
    %v60 = vunpack.c.l.b16 %v52
    %v61 = vunpack.c.l.b16 %v53
    %v62 = vunpack.c.l.b16 %v54
    %v63 = vunpack.c.l.b16 %v55
    %v64 = vpack.c.b16 %v61, %v60
    %v65 = vpack.c.b16 %v63, %v62
    %vm68 = vcmask 261120
    %v70 = vsel %vm68, %v51, 0
    %72 = vmatprep.subr.bf16.mxu0 0
    %73 = vmatpush1.bf16.msra.mxu0 0
    %74 = vmatprep.subr.bf16.mxu0 0
    %75 = vmatpush1.bf16.msra.mxu0 0
    %76 = vmatprep.subr.bf16.mxu0 0
    %77 = vmatpush1.bf16.msra.mxu0 0
    %78 = vmatprep.subr.bf16.mxu0 0
    %79 = vmatpush1.bf16.msra.mxu0 0
    %80 = vmatprep.subr.bf16.mxu0 0
    %81 = vmatpush1.bf16.msra.mxu0 0
    %82 = vmatprep.subr.bf16.mxu0 0
    %83 = vmatpush1.bf16.msra.mxu0 0
    %84 = vmatprep.subr.bf16.mxu0 0
    %85 = vmatpush1.bf16.msra.mxu0 %v65
    %86 = vmatprep.subr.bf16.mxu0 0
    %87 = vmatpush1.bf16.msra.mxu0 %v64
    %88 = vmatprep.subr.bf16.mxu0 0
    %89 = vmatpush2.bf16.msra.mxu0 0
    %90 = vmatprep.subr.bf16.mxu0 0
    %91 = vmatpush2.bf16.msra.mxu0 0
    %92 = vmatprep.subr.bf16.mxu0 0
    %93 = vmatpush2.bf16.msra.mxu0 0
    %94 = vmatprep.subr.bf16.mxu0 0
    %95 = vmatpush2.bf16.msra.mxu0 0
    %96 = vmatprep.subr.bf16.mxu0 0
    %97 = vmatpush2.bf16.msra.mxu0 0
    %98 = vmatprep.subr.bf16.mxu0 0
    %99 = vmatpush2.bf16.msra.mxu0 0
    %100 = vmatprep.subr.bf16.mxu0 0
    %101 = vmatpush2.bf16.msra.mxu0 0
    %102 = vmatprep.subr.bf16.mxu0 0
    %103 = vmatpush2.bf16.msra.mxu0 0
    %104 = vmatprep.mubr.bf16.mxu0 0
    %105 = vmatmul.mubr.bf16.gmra.mxu0 %v70
    %v106 = vpop.f32.mrf.mxu0
    %v107 = vadd.f32 0.0, %v106
    %v108 = vpop.f32.mrf.mxu0
    %v109 = vpop.f32.mrf.mxu0
    %v110 = vadd.f32 0.0, %v109
    %v111 = vpop.f32.mrf.mxu0
    %112 = vdwg.mxu0
    %v113 = vadd.f32 %v47, %v107
    %v114 = vadd.f32 %v48, %v110
    %115 = vst [vmem:[#allocation2] sm:$0xff] %v113
    %116 = vst [vmem:[#allocation2 + $0x8] sm:$0xff] %v114
    // Predicated region
    $region22: #{tpu_custom_call.1} parent=1 // pred_check
      %p117 = pneg %p41
    $region23: #{tpu_custom_call.1} parent=1 // pred_check_branch
      %119 = sbr.rel (%p117) target = $region25
    $region24: #{tpu_custom_call.1} parent=1 // pred_region
      %v120 = vld [vmem:[#allocation2] sm:$0xff]
      %v121 = vld [vmem:[#allocation2 + $0x8] sm:$0xff]
      %v122 = vxor.u32 %v120, 2147483648
      %v123 = vxor.u32 %v121, 2147483648
      %v124 = vmul.f32 %v122, 1.442695
      %v125 = vpow.pop %v124
      %v126 = vmul.f32 %v123, 1.442695
      %v127 = vpow.pop %v126
      %v128 = vadd.f32 %v125, 1.0
      %v129 = vadd.f32 %v127, 1.0
      %v130 = vrcp.pop %v128
      %v131 = vmul.f32 1.0, %v130
      %v132 = vrcp.pop %v129
      %v133 = vmul.f32 1.0, %v132
      %v134 = vpack.c.bf16 %v133, %v131
      %v136 = vunpack.c.l.b16 %v134
      %v137 = vunpack.c.h.b16 %v134
      %v138 = vpack.c.b16 %v136, %v136
      %v139 = vpack.c.b16 %v137, %v137
      %142 = vst [vmem:[#allocation8] sm:$0xf] %v138
      %143 = vst [vmem:[#allocation8 + $0x4] sm:$0xf] %v139
    $region25: #{tpu_custom_call.1} parent=1 // pred_fallthru
      _
    // Predicated region
    $region26: #{tpu_custom_call.1} parent=1 // pred_check
      _
    $region27: #{tpu_custom_call.1} parent=1 // pred_check_branch
      %145 = sbr.rel (0) target = $region29
    $region28: #{tpu_custom_call.1} parent=1 // pred_region
      %s147 = ssub.s32 128, 128
      %148 = vsyncadd [#allocation5], %s147
      %s149 = sshll.u32 [#allocation8], 4
      %s150 = int_to_ptr.vmem [resolvable:$true] %s149
      %155 = dma.vmem_to_hbm [thread:$0]  %s150, 128, %s2, [#allocation5], 64, 64, 4
    $region29: #{tpu_custom_call.1} parent=1 // pred_fallthru
      _
    // Predicated region
    $region30: #{tpu_custom_call.1} parent=1 // pred_check
      _
    $region31: #{tpu_custom_call.1} parent=1 // pred_check_branch
      %157 = sbr.rel (0) target = $region33
    $region32: #{tpu_custom_call.1} parent=1 // pred_region
      %158 = dma.done [#allocation5], 128
    $region33: #{tpu_custom_call.1} parent=1 // pred_fallthru
      _
    %159 = vsyncpa [#allocation4], 1
    %160 = vsyncpa [#allocation7], 1
    %161 = vsyncpa [#allocation5], 1

</llo_original>
